<compile_context>
chip_gen: v6e
topology: v6e:2x2x1
jax: 0.10.0
libtpu: 0.0.40
codegen_flags: <defaults>
</compile_context>

<pallas_src>
import functools

import jax
import jax.numpy as jnp
from jax.experimental import pallas as pl
from jax.experimental.pallas import tpu as pltpu


def _ttfs_kernel(step, x_ref, o_ref):
    """One grid iteration: all `step` TTFS slices for one lane-dense row tile."""
    x = x_ref[...]                              # (tile_rows, LANE) f32
    xs = x * jnp.float32(step)                  # once per element (not per step)
    for t in range(step):                       # static unroll (step is Python int)
        upper = jnp.float32(step - t)           # step - i
        mask = (xs <= upper) & (xs > upper - 1.0)
        o_ref[t] = jnp.where(mask, jnp.float32(1.0 / (t + 1)), jnp.float32(0.0))


def ttfs_encode_pallas(inputs, step, lane=512):
    """TTFS encode: (b, c, h, w) float -> (step, b, c, h, w) float32."""
    orig_shape = inputs.shape
    total = 1
    for d in orig_shape:
        total *= d

    x = inputs.reshape(-1).astype(jnp.float32)

    # Lane-dense view: (rows, lane) with lane a large multiple of 128.
    rows = -(-total // lane)                    # ceil
    rows_min = -(-rows // 8) * 8                # pad rows up to a multiple of 8

    # Row-tile size from a conservative VMEM budget (double-buffered input tile
    # + double-buffered (step, tile_rows, lane) output tile), safe for v5e's
    # 16 MiB scoped-VMEM default and for v7x's 64 MiB physical VMEM.
    budget_bytes = 12 * 1024 * 1024
    bytes_per_row = 2 * lane * 4 * (1 + step)
    tile_rows = (budget_bytes // bytes_per_row) // 8 * 8
    tile_rows = max(8, min(tile_rows, 2048))
    tile_rows = min(tile_rows, rows_min)        # tiny inputs: single small tile

    num_tiles = -(-rows // tile_rows)
    rows_padded = num_tiles * tile_rows
    pad = rows_padded * lane - total
    if pad:
        x = jnp.pad(x, (0, pad))
    x2 = x.reshape(rows_padded, lane)

    out = pl.pallas_call(
        functools.partial(_ttfs_kernel, step),
        out_shape=jax.ShapeDtypeStruct((step, rows_padded, lane), jnp.float32),
        grid=(num_tiles,),
        in_specs=[pl.BlockSpec((tile_rows, lane), lambda r: (r, 0))],
        out_specs=pl.BlockSpec((step, tile_rows, lane), lambda r: (0, r, 0)),
        compiler_params=pltpu.CompilerParams(
            dimension_semantics=("parallel",)),
        cost_estimate=pl.CostEstimate(
            flops=5 * rows_padded * lane * step,
            transcendentals=0,
            bytes_accessed=rows_padded * lane * 4 * (1 + step)),
    )(x2)

    if pad:
        out = out.reshape(step, rows_padded * lane)[:, :total]
    return out.reshape((step,) + orig_shape)


class Encoder:
    """JAX/Pallas port of braincog.base.encoder.encoder.Encoder (ttfs path)."""

    def __init__(self, step, encode_type='ttfs', **kwargs):
        assert encode_type == 'ttfs', "only the default 'ttfs' path is ported"
        self.step = step
        self.encode_type = encode_type
        self.temporal_flatten = kwargs.get('temporal_flatten', False)
        self.layer_by_layer = kwargs.get('layer_by_layer', False)
        self.no_encode = kwargs.get('adaptive_node', False)
        self.groups = kwargs.get('n_groups', 1)

    def __call__(self, inputs, deletion_prob=None, shift_var=None):
        if inputs.ndim == 5:
            # already (b, t, c, h, w): just permute to (t, b, c, h, w)
            outputs = jnp.transpose(inputs, (1, 0, 2, 3, 4))
        else:
            outputs = ttfs_encode_pallas(inputs, self.step)
        # TODO(synk): delete/shift use torch RNG in-place ops; not needed for
        # the default forward (deletion_prob=None, shift_var=None), so omitted.
        # TODO(synk): when temporal_flatten / n_groups / layer_by_layer are set,
        # the final layout could be written directly from the kernel's out_specs
        # instead of a post-hoc transpose; default path needs neither.
        if self.temporal_flatten or self.no_encode:
            t, b, c, h, w = outputs.shape
            outputs = outputs.transpose(1, 0, 2, 3, 4).reshape(1, b, t * c, h, w)
        elif self.groups != 1:
            t, b, c, h, w = outputs.shape
            outputs = outputs.transpose(1, 2, 0, 3, 4).reshape(b, c * t, h, w)
        elif self.layer_by_layer:
            t, b, c, h, w = outputs.shape
            outputs = outputs.reshape(t * b, c, h, w)
        return outputs


def _ttfs_reference(inputs, step):
    """Pure-JAX reference of the PyTorch ttfs() for correctness checking."""
    x = inputs.astype(jnp.float32)
    i = jnp.arange(step, dtype=jnp.float32).reshape((step,) + (1,) * x.ndim)
    xs = x[None] * float(step)
    mask = (xs <= (step - i)) & (xs > (step - i - 1.0))
    return jnp.where(mask, 1.0 / (i + 1.0), 0.0)


if __name__ == "__main__":
    step = 4
    key = jax.random.PRNGKey(0)
    enc = Encoder(step, encode_type='ttfs')

    # Small primary check (matches the module's typical NCHW input).
    b, c, h, w = 2, 4, 16, 16
    x = jax.random.uniform(key, (b, c, h, w), dtype=jnp.float32)
    out = jax.block_until_ready(enc(x))
    assert out.shape == (step, b, c, h, w), out.shape
    ref = _ttfs_reference(x, step)
    assert jnp.allclose(out, ref), "Pallas TTFS output mismatch vs reference (small)"

    # Larger check exercising the multi-tile + tail-padding path.
    b2, c2, h2, w2 = 4, 3, 224, 224
    x2 = jax.random.uniform(jax.random.PRNGKey(1), (b2, c2, h2, w2),
                            dtype=jnp.float32)
    out2 = jax.block_until_ready(enc(x2))
    assert out2.shape == (step, b2, c2, h2, w2), out2.shape
    ref2 = _ttfs_reference(x2, step)
    assert jnp.allclose(out2, ref2), "Pallas TTFS output mismatch vs reference (tiled)"

    print("KERNEL_OK")
</pallas_src>

<mosaic_0001>
module attributes {stable_mosaic.version = 11 : i64} {
  func.func @_ttfs_kernel(%arg0: i32, %arg1: memref<8x512xf32, #tpu.memory_space<vmem>>, %arg2: memref<4x8x512xf32, #tpu.memory_space<vmem>>) attributes {dimension_semantics = [#tpu.dimension_semantics<parallel>], iteration_bounds = array<i64: 1>, scalar_prefetch = 0 : i64, scratch_operands = 0 : i64, tpu.core_type = #tpu.core_type<tc>, window_params = [{transform_indices = @transform_0, window_bounds = array<i64: 8, 512>}, {transform_indices = @transform_1, window_bounds = array<i64: 4, 8, 512>}]} {
    %c0 = arith.constant 0 : index
    %c0_0 = arith.constant 0 : index
    %0 = vector.load %arg1[%c0, %c0_0] : memref<8x512xf32, #tpu.memory_space<vmem>>, vector<8x512xf32>
    %cst = arith.constant 4.000000e+00 : f32
    %1 = vector.broadcast %cst : f32 to vector<8x512xf32>
    %2 = arith.mulf %0, %1 : vector<8x512xf32>
    %cst_1 = arith.constant 4.000000e+00 : f32
    %3 = vector.broadcast %cst_1 : f32 to vector<8x512xf32>
    %4 = arith.cmpf ole, %2, %3 : vector<8x512xf32>
    %cst_2 = arith.constant 4.000000e+00 : f32
    %cst_3 = arith.constant 1.000000e+00 : f32
    %5 = arith.subf %cst_2, %cst_3 : f32
    %6 = vector.broadcast %5 : f32 to vector<8x512xf32>
    %7 = arith.cmpf ogt, %2, %6 : vector<8x512xf32>
    %8 = arith.andi %4, %7 : vector<8x512xi1>
    %cst_4 = arith.constant 1.000000e+00 : f32
    %cst_5 = arith.constant 0.000000e+00 : f32
    %9 = vector.broadcast %cst_4 : f32 to vector<8x512xf32>
    %10 = vector.broadcast %cst_5 : f32 to vector<8x512xf32>
    %11 = arith.select %8, %9, %10 : vector<8x512xi1>, vector<8x512xf32>
    %c0_6 = arith.constant 0 : index
    %c0_7 = arith.constant 0 : index
    %c0_8 = arith.constant 0 : index
    %12 = vector.load %arg2[%c0_6, %c0_7, %c0_8] : memref<4x8x512xf32, #tpu.memory_space<vmem>>, vector<1x8x512xf32>
    %13 = vector.shape_cast %12 : vector<1x8x512xf32> to vector<8x512xf32>
    %14 = vector.shape_cast %11 : vector<8x512xf32> to vector<1x8x512xf32>
    tpu.vector_store %arg2[%c0_6, %c0_7, %c0_8], %14 {strides = array<i32>} : memref<4x8x512xf32, #tpu.memory_space<vmem>>, vector<1x8x512xf32>,
    %cst_9 = arith.constant 3.000000e+00 : f32
    %15 = vector.broadcast %cst_9 : f32 to vector<8x512xf32>
    %16 = arith.cmpf ole, %2, %15 : vector<8x512xf32>
    %cst_10 = arith.constant 3.000000e+00 : f32
    %cst_11 = arith.constant 1.000000e+00 : f32
    %17 = arith.subf %cst_10, %cst_11 : f32
    %18 = vector.broadcast %17 : f32 to vector<8x512xf32>
    %19 = arith.cmpf ogt, %2, %18 : vector<8x512xf32>
    %20 = arith.andi %16, %19 : vector<8x512xi1>
    %cst_12 = arith.constant 5.000000e-01 : f32
    %cst_13 = arith.constant 0.000000e+00 : f32
    %21 = vector.broadcast %cst_12 : f32 to vector<8x512xf32>
    %22 = vector.broadcast %cst_13 : f32 to vector<8x512xf32>
    %23 = arith.select %20, %21, %22 : vector<8x512xi1>, vector<8x512xf32>
    %c1 = arith.constant 1 : index
    %c0_14 = arith.constant 0 : index
    %c0_15 = arith.constant 0 : index
    %24 = vector.load %arg2[%c1, %c0_14, %c0_15] : memref<4x8x512xf32, #tpu.memory_space<vmem>>, vector<1x8x512xf32>
    %25 = vector.shape_cast %24 : vector<1x8x512xf32> to vector<8x512xf32>
    %26 = vector.shape_cast %23 : vector<8x512xf32> to vector<1x8x512xf32>
    tpu.vector_store %arg2[%c1, %c0_14, %c0_15], %26 {strides = array<i32>} : memref<4x8x512xf32, #tpu.memory_space<vmem>>, vector<1x8x512xf32>,
    %cst_16 = arith.constant 2.000000e+00 : f32
    %27 = vector.broadcast %cst_16 : f32 to vector<8x512xf32>
    %28 = arith.cmpf ole, %2, %27 : vector<8x512xf32>
    %cst_17 = arith.constant 2.000000e+00 : f32
    %cst_18 = arith.constant 1.000000e+00 : f32
    %29 = arith.subf %cst_17, %cst_18 : f32
    %30 = vector.broadcast %29 : f32 to vector<8x512xf32>
    %31 = arith.cmpf ogt, %2, %30 : vector<8x512xf32>
    %32 = arith.andi %28, %31 : vector<8x512xi1>
    %cst_19 = arith.constant 0.333333343 : f32
    %cst_20 = arith.constant 0.000000e+00 : f32
    %33 = vector.broadcast %cst_19 : f32 to vector<8x512xf32>
    %34 = vector.broadcast %cst_20 : f32 to vector<8x512xf32>
    %35 = arith.select %32, %33, %34 : vector<8x512xi1>, vector<8x512xf32>
    %c2 = arith.constant 2 : index
    %c0_21 = arith.constant 0 : index
    %c0_22 = arith.constant 0 : index
    %36 = vector.load %arg2[%c2, %c0_21, %c0_22] : memref<4x8x512xf32, #tpu.memory_space<vmem>>, vector<1x8x512xf32>
    %37 = vector.shape_cast %36 : vector<1x8x512xf32> to vector<8x512xf32>
    %38 = vector.shape_cast %35 : vector<8x512xf32> to vector<1x8x512xf32>
    tpu.vector_store %arg2[%c2, %c0_21, %c0_22], %38 {strides = array<i32>} : memref<4x8x512xf32, #tpu.memory_space<vmem>>, vector<1x8x512xf32>,
    %cst_23 = arith.constant 1.000000e+00 : f32
    %39 = vector.broadcast %cst_23 : f32 to vector<8x512xf32>
    %40 = arith.cmpf ole, %2, %39 : vector<8x512xf32>
    %cst_24 = arith.constant 1.000000e+00 : f32
    %cst_25 = arith.constant 1.000000e+00 : f32
    %41 = arith.subf %cst_24, %cst_25 : f32
    %42 = vector.broadcast %41 : f32 to vector<8x512xf32>
    %43 = arith.cmpf ogt, %2, %42 : vector<8x512xf32>
    %44 = arith.andi %40, %43 : vector<8x512xi1>
    %cst_26 = arith.constant 2.500000e-01 : f32
    %cst_27 = arith.constant 0.000000e+00 : f32
    %45 = vector.broadcast %cst_26 : f32 to vector<8x512xf32>
    %46 = vector.broadcast %cst_27 : f32 to vector<8x512xf32>
    %47 = arith.select %44, %45, %46 : vector<8x512xi1>, vector<8x512xf32>
    %c3 = arith.constant 3 : index
    %c0_28 = arith.constant 0 : index
    %c0_29 = arith.constant 0 : index
    %48 = vector.load %arg2[%c3, %c0_28, %c0_29] : memref<4x8x512xf32, #tpu.memory_space<vmem>>, vector<1x8x512xf32>
    %49 = vector.shape_cast %48 : vector<1x8x512xf32> to vector<8x512xf32>
    %50 = vector.shape_cast %47 : vector<8x512xf32> to vector<1x8x512xf32>
    tpu.vector_store %arg2[%c3, %c0_28, %c0_29], %50 {strides = array<i32>} : memref<4x8x512xf32, #tpu.memory_space<vmem>>, vector<1x8x512xf32>,
    return
  }
  func.func @transform_0(%arg0: i32) -> (i32, i32) {
    %c0_i32 = arith.constant 0 : i32
    %c0_i32_0 = arith.constant 0 : i32
    return %arg0, %c0_i32 : i32, i32
  }
  func.func @transform_1(%arg0: i32) -> (i32, i32, i32) {
    %c0_i32 = arith.constant 0 : i32
    %c0_i32_0 = arith.constant 0 : i32
    %c0_i32_1 = arith.constant 0 : i32
    return %c0_i32, %arg0, %c0_i32_0 : i32, i32, i32
  }
}

</mosaic_0001>

<llo_original>
// kernel: tpu_custom_call.1
$region0: #{tpu_custom_call.1}
  #allocation0 [shape = 'u32[]', space=smem, size = 0x4, offset = 0x4, fixed_abs, tag = 'smem constant byte address 0x4 - core index']
  #allocation1 [shape = 'u32[144,128]{1,0:T(1,128)}', space=vmem, size = 0x12000, scoped, tag = 'internal scratch']
  %s0 = inlined_call_operand.hbm [shape: f32[8,512], index: 0, kind: input, shape index: {}]
  %s1 = inlined_call_operand.hbm [shape: f32[4,8,512], index: 1, kind: output, shape index: {}]
  %s2 = sld [smem:[#allocation0]]
  $region18: #{tpu_custom_call.1} parent=0
    _
  %s4 = ssub.s32 1, %s2
  %s5 = scalar_select 0, %s4, %s2
  $region1: #{tpu_custom_call.1} parent=0
    #allocation2 [shape = 'u8[16384]{0}', space=vmem, size = 0x4000, scoped, tag = 'input window, operand 0, single buffered']
    #allocation3 [shape = 's32[1]{0}', space=sflag, size = 0x4, scoped, tag = 'scoped memory for tpu_custom_call.1']
    #allocation4 [shape = 's32[1]{0}', space=sflag, size = 0x4, scoped, tag = 'scoped memory for tpu_custom_call.1']
    #allocation5 [shape = 'u8[65536]{0}', space=vmem, size = 0x10000, scoped, tag = 'output window, operand 0, single buffered']
    %6 = vsyncpa [#allocation3], 0
    %7 = vsyncpa [#allocation4], 0
    // Predicated region
    $region2: #{tpu_custom_call.1} parent=1 // pred_check
      _
    $region3: #{tpu_custom_call.1} parent=1 // pred_check_branch
      %9 = sbr.rel (0) target = $region5
    $region4: #{tpu_custom_call.1} parent=1 // pred_region
      %s11 = ssub.s32 512, 512
      %12 = vsyncadd [#allocation3], %s11
      %s14 = sshll.u32 [#allocation2], 4
      %s15 = int_to_ptr.vmem [resolvable:$true] %s14
      %17 = dma.hbm_to_vmem [thread:$0]  %s0, 512, %s15, [#allocation3]
    $region5: #{tpu_custom_call.1} parent=1 // pred_fallthru
      _
    // Predicated region
    $region6: #{tpu_custom_call.1} parent=1 // pred_check
      _
    $region7: #{tpu_custom_call.1} parent=1 // pred_check_branch
      %19 = sbr.rel (0) target = $region9
    $region8: #{tpu_custom_call.1} parent=1 // pred_region
      %20 = dma.done [#allocation3], 512
    $region9: #{tpu_custom_call.1} parent=1 // pred_fallthru
      _
    %v21 = vld [vmem:[#allocation2] sm:$0xff]
    %v22 = vld [vmem:[#allocation2 + $0x8] sm:$0xff]
    %v23 = vld [vmem:[#allocation2 + $0x10] sm:$0xff]
    %v24 = vld [vmem:[#allocation2 + $0x18] sm:$0xff]
    %v25 = vmul.f32 %v21, 4.0
    %v26 = vmul.f32 %v22, 4.0
    %v27 = vmul.f32 %v23, 4.0
    %v28 = vmul.f32 %v24, 4.0
    %vm29 = vcmp.le.f32.partialorder %v25, 4.0
    %vm30 = vcmp.le.f32.partialorder %v26, 4.0
    %vm31 = vcmp.le.f32.partialorder %v27, 4.0
    %vm32 = vcmp.le.f32.partialorder %v28, 4.0
    %vm33 = vcmp.gt.f32.partialorder %v25, 3.0
    %vm34 = vcmp.gt.f32.partialorder %v26, 3.0
    %vm35 = vcmp.gt.f32.partialorder %v27, 3.0
    %vm36 = vcmp.gt.f32.partialorder %v28, 3.0
    %vm37 = vmand %vm29, %vm33
    %vm38 = vmand %vm30, %vm34
    %vm39 = vmand %vm31, %vm35
    %vm40 = vmand %vm32, %vm36
    %v41 = vsel %vm37, 1.0, 0.0
    %v42 = vsel %vm38, 1.0, 0.0
    %v43 = vsel %vm39, 1.0, 0.0
    %v44 = vsel %vm40, 1.0, 0.0
    %45 = vst [vmem:[#allocation5] sm:$0xff] %v41
    %46 = vst [vmem:[#allocation5 + $0x8] sm:$0xff] %v42
    %47 = vst [vmem:[#allocation5 + $0x10] sm:$0xff] %v43
    %48 = vst [vmem:[#allocation5 + $0x18] sm:$0xff] %v44
    %vm49 = vcmp.le.f32.partialorder %v25, 3.0
    %vm50 = vcmp.le.f32.partialorder %v26, 3.0
    %vm51 = vcmp.le.f32.partialorder %v27, 3.0
    %vm52 = vcmp.le.f32.partialorder %v28, 3.0
    %vm53 = vcmp.gt.f32.partialorder %v25, 2.0
    %vm54 = vcmp.gt.f32.partialorder %v26, 2.0
    %vm55 = vcmp.gt.f32.partialorder %v27, 2.0
    %vm56 = vcmp.gt.f32.partialorder %v28, 2.0
    %vm57 = vmand %vm49, %vm53
    %vm58 = vmand %vm50, %vm54
    %vm59 = vmand %vm51, %vm55
    %vm60 = vmand %vm52, %vm56
    %v61 = vsel %vm57, 0.5, 0.0
    %v62 = vsel %vm58, 0.5, 0.0
    %v63 = vsel %vm59, 0.5, 0.0
    %v64 = vsel %vm60, 0.5, 0.0
    %s65 = scalar_lea.vmem [#allocation5], 32
    %66 = vst [vmem:[%s65] sm:$0xff] %v61
    %67 = vst [vmem:[%s65 + $0x8] sm:$0xff] %v62
    %68 = vst [vmem:[%s65 + $0x10] sm:$0xff] %v63
    %69 = vst [vmem:[%s65 + $0x18] sm:$0xff] %v64
    %vm70 = vcmp.le.f32.partialorder %v25, 2.0
    %vm71 = vcmp.le.f32.partialorder %v26, 2.0
    %vm72 = vcmp.le.f32.partialorder %v27, 2.0
    %vm73 = vcmp.le.f32.partialorder %v28, 2.0
    %vm74 = vcmp.gt.f32.partialorder %v25, 1.0
    %vm75 = vcmp.gt.f32.partialorder %v26, 1.0
    %vm76 = vcmp.gt.f32.partialorder %v27, 1.0
    %vm77 = vcmp.gt.f32.partialorder %v28, 1.0
    %vm78 = vmand %vm70, %vm74
    %vm79 = vmand %vm71, %vm75
    %vm80 = vmand %vm72, %vm76
    %vm81 = vmand %vm73, %vm77
    %v82 = vsel %vm78, 0.33333334, 0.0
    %v83 = vsel %vm79, 0.33333334, 0.0
    %v84 = vsel %vm80, 0.33333334, 0.0
    %v85 = vsel %vm81, 0.33333334, 0.0
    %s86 = scalar_lea.vmem [#allocation5], 64
    %87 = vst [vmem:[%s86] sm:$0xff] %v82
    %88 = vst [vmem:[%s86 + $0x8] sm:$0xff] %v83
    %89 = vst [vmem:[%s86 + $0x10] sm:$0xff] %v84
    %90 = vst [vmem:[%s86 + $0x18] sm:$0xff] %v85
    %vm91 = vcmp.le.f32.partialorder %v25, 1.0
    %vm92 = vcmp.le.f32.partialorder %v26, 1.0
    %vm93 = vcmp.le.f32.partialorder %v27, 1.0
    %vm94 = vcmp.le.f32.partialorder %v28, 1.0
    %vm95 = vcmp.gt.f32.partialorder %v25, 0.0
    %vm96 = vcmp.gt.f32.partialorder %v26, 0.0
    %vm97 = vcmp.gt.f32.partialorder %v27, 0.0
    %vm98 = vcmp.gt.f32.partialorder %v28, 0.0
    %vm99 = vmand %vm91, %vm95
    %vm100 = vmand %vm92, %vm96
    %vm101 = vmand %vm93, %vm97
    %vm102 = vmand %vm94, %vm98
    %v103 = vsel %vm99, 0.25, 0.0
    %v104 = vsel %vm100, 0.25, 0.0
    %v105 = vsel %vm101, 0.25, 0.0
    %v106 = vsel %vm102, 0.25, 0.0
    %s107 = scalar_lea.vmem [#allocation5], 96
    %108 = vst [vmem:[%s107] sm:$0xff] %v103
    %109 = vst [vmem:[%s107 + $0x8] sm:$0xff] %v104
    %110 = vst [vmem:[%s107 + $0x10] sm:$0xff] %v105
    %111 = vst [vmem:[%s107 + $0x18] sm:$0xff] %v106
    // Predicated region
    $region10: #{tpu_custom_call.1} parent=1 // pred_check
      _
    $region11: #{tpu_custom_call.1} parent=1 // pred_check_branch
      %113 = sbr.rel (0) target = $region13
    $region12: #{tpu_custom_call.1} parent=1 // pred_region
      %s115 = ssub.s32 2048, 2048
      %116 = vsyncadd [#allocation4], %s115
      %s117 = sshll.u32 [#allocation5], 4
      %s118 = int_to_ptr.vmem [resolvable:$true] %s117
      %123 = dma.vmem_to_hbm [thread:$0]  %s118, 2048, %s1, [#allocation4], 512, 512, 32
    $region13: #{tpu_custom_call.1} parent=1 // pred_fallthru
      _
    // Predicated region
    $region14: #{tpu_custom_call.1} parent=1 // pred_check
      _
    $region15: #{tpu_custom_call.1} parent=1 // pred_check_branch
      %125 = sbr.rel (0) target = $region17
    $region16: #{tpu_custom_call.1} parent=1 // pred_region
      %126 = dma.done [#allocation4], 2048
    $region17: #{tpu_custom_call.1} parent=1 // pred_fallthru
      _
    %127 = vsyncpa [#allocation3], 1
    %128 = vsyncpa [#allocation4], 1

</llo_original>
